<compile_context>
chip_gen: v7x
topology: tpu7x:2x2x1
jax: 0.10.0
libtpu: 0.0.40
codegen_flags: <defaults>
</compile_context>

<pallas_src>
import functools
import math

import jax
import jax.numpy as jnp
from jax.experimental import pallas as pl
from jax.experimental.pallas import tpu as pltpu


_COMPILER_PARAMS = pltpu.CompilerParams(
    dimension_semantics=("parallel",),
    vmem_limit_bytes=48 * 1024 * 1024,
)


def _round_up(x, m):
    return ((x + m - 1) // m) * m


def _pick_row_tile(rows_eff, width, in_bytes, out_bytes, row_mult):
    """Largest row tile whose double-buffered (in + out) working set fits ~24 MiB."""
    budget = 24 * 1024 * 1024
    per_row = 2 * width * (in_bytes + out_bytes)  # x2: double buffering
    tr = max(row_mult, (budget // max(per_row, 1)) // row_mult * row_mult)
    tr = min(tr, 2048)
    if rows_eff <= row_mult:
        return max(rows_eff, 1)  # single full-extent block (allowed by BlockSpec rules)
    # Keep at least 2 grid steps so both v7x TensorCores get work on the parallel axis.
    tr = min(tr, _round_up(pl.cdiv(rows_eff, 2), row_mult))
    return max(tr, row_mult)


def _ln_plain_kernel(x_ref, gamma_ref, beta_ref, o_ref, *, eps, inv_n, inv_nm1):
    # x_ref: (tile_rows, hidden); gamma/beta: (1, hidden)
    x = x_ref[...].astype(jnp.float32)
    s = jnp.sum(x, axis=-1, keepdims=True)                          # (tr, 1)
    mean = s * inv_n                                                # precomputed 1/N
    diff = x - mean
    var = jnp.sum(diff * diff, axis=-1, keepdims=True) * inv_nm1    # unbiased (N-1)
    # Per-row reciprocal (tr values) instead of a (tr, hidden) broadcast divide.
    # approx=False keeps parity with the exact-division reference; flip to True
    # to push it into the free EUP slot at ~1e-4 relative error.
    inv = pl.reciprocal(jnp.sqrt(var) + eps, approx=False)          # (tr, 1)
    gamma = gamma_ref[...].astype(jnp.float32)
    beta = beta_ref[...].astype(jnp.float32)
    o_ref[...] = ((diff * inv) * gamma + beta).astype(o_ref.dtype)


def _ln_folded_kernel(x_ref, gamma_ref, beta_ref, seg_sum_ref, seg_bcast_ref, o_ref,
                      *, eps, inv_n, inv_nm1):
    # x_ref: (tile_rows, 128) -- G = 128 // hidden original rows folded into the
    # lane dim.  gamma/beta: (1, 128), pre-tiled in the wrapper.
    # seg_sum/seg_bcast: (128, 128) 0/1 indicator matrices built in the wrapper
    # (constant index_map -> DMA'd once, no per-step iota/compare work).
    x = x_ref[...].astype(jnp.float32)
    seg_sum = seg_sum_ref[...]
    seg_bcast = seg_bcast_ref[...]

    # Segmented reductions / broadcasts as matmuls on the otherwise-idle MXU:
    # every vector op on x-sized data stays lane-dense.
    s = jnp.dot(x, seg_sum, preferred_element_type=jnp.float32)            # seg sums
    mean_b = jnp.dot(s * inv_n, seg_bcast, preferred_element_type=jnp.float32)
    diff = x - mean_b
    ss = jnp.dot(diff * diff, seg_sum, preferred_element_type=jnp.float32)
    inv = pl.reciprocal(jnp.sqrt(ss * inv_nm1) + eps, approx=False)
    inv_b = jnp.dot(inv, seg_bcast, preferred_element_type=jnp.float32)
    gamma = gamma_ref[...].astype(jnp.float32)
    beta = beta_ref[...].astype(jnp.float32)
    o_ref[...] = ((diff * inv_b) * gamma + beta).astype(o_ref.dtype)


def layernorm_pallas(x, gamma, beta, eps=1e-6):
    """LayerNorm over the last axis of x (torch.std / unbiased-variance semantics)."""
    orig_shape = x.shape
    hidden = int(orig_shape[-1])
    rows = math.prod(orig_shape[:-1])  # static python int (jit-safe)
    out_dtype = x.dtype
    in_bytes = jnp.dtype(x.dtype).itemsize
    out_bytes = jnp.dtype(out_dtype).itemsize
    row_mult = 8 if min(in_bytes, out_bytes) >= 4 else 16

    eps = float(eps)
    inv_n = 1.0 / hidden
    inv_nm1 = 1.0 / (hidden - 1) if hidden > 1 else float("nan")  # torch.std(1 elem)=nan

    lane = 128
    g = lane // hidden if hidden > 0 else 0
    fold = (
        1 < hidden < lane
        and lane % hidden == 0
        and rows % max(g, 1) == 0
        and rows >= max(g, 1)
    )

    if fold:
        width = lane
        rows_eff = rows // g
        x2 = x.reshape(rows_eff, width)
        gamma2 = jnp.tile(gamma.reshape(-1).astype(jnp.float32), g).reshape(1, width)
        beta2 = jnp.tile(beta.reshape(-1).astype(jnp.float32), g).reshape(1, width)

        # 0/1 segment matrices (hoisted out of the kernel).
        r = jnp.arange(width)[:, None]
        c = jnp.arange(width)[None, :]
        seg_sum = ((c * hidden <= r) & (r < (c + 1) * hidden)).astype(jnp.float32)
        seg_bcast = seg_sum.T

        tr = _pick_row_tile(rows_eff, width, in_bytes, out_bytes, row_mult)
        kernel = functools.partial(
            _ln_folded_kernel, eps=eps, inv_n=inv_n, inv_nm1=inv_nm1
        )
        out2 = pl.pallas_call(
            kernel,
            out_shape=jax.ShapeDtypeStruct((rows_eff, width), out_dtype),
            grid_spec=pltpu.PrefetchScalarGridSpec(
                num_scalar_prefetch=0,
                grid=(pl.cdiv(rows_eff, tr),),
                in_specs=[
                    pl.BlockSpec((tr, width), lambda i: (i, 0)),
                    pl.BlockSpec((1, width), lambda i: (0, 0)),
                    pl.BlockSpec((1, width), lambda i: (0, 0)),
                    pl.BlockSpec((width, width), lambda i: (0, 0)),
                    pl.BlockSpec((width, width), lambda i: (0, 0)),
                ],
                out_specs=pl.BlockSpec((tr, width), lambda i: (i, 0)),
            ),
            compiler_params=_COMPILER_PARAMS,
        )(x2, gamma2, beta2, seg_sum, seg_bcast)
        return out2.reshape(orig_shape)

    # Plain path: hidden >= 128 (already lane-dense), or shapes that don't fold cleanly.
    x2 = x.reshape(rows, hidden)
    gamma2 = gamma.reshape(1, hidden)
    beta2 = beta.reshape(1, hidden)
    tr = _pick_row_tile(rows, hidden, in_bytes, out_bytes, row_mult)
    kernel = functools.partial(_ln_plain_kernel, eps=eps, inv_n=inv_n, inv_nm1=inv_nm1)
    out2 = pl.pallas_call(
        kernel,
        out_shape=jax.ShapeDtypeStruct((rows, hidden), out_dtype),
        grid_spec=pltpu.PrefetchScalarGridSpec(
            num_scalar_prefetch=0,
            grid=(pl.cdiv(rows, tr),),
            in_specs=[
                pl.BlockSpec((tr, hidden), lambda i: (i, 0)),
                pl.BlockSpec((1, hidden), lambda i: (0, 0)),
                pl.BlockSpec((1, hidden), lambda i: (0, 0)),
            ],
            out_specs=pl.BlockSpec((tr, hidden), lambda i: (i, 0)),
        ),
        compiler_params=_COMPILER_PARAMS,
    )(x2, gamma2, beta2)
    return out2.reshape(orig_shape)


def layernorm_ref(x, gamma, beta, eps=1e-6):
    xf = x.astype(jnp.float32)
    mean = jnp.mean(xf, axis=-1, keepdims=True)
    std = jnp.std(xf, axis=-1, keepdims=True, ddof=1)  # unbiased, like torch.std
    return (gamma * (xf - mean) / (std + eps) + beta).astype(x.dtype)


if __name__ == "__main__":
    key = jax.random.PRNGKey(0)
    eps = 1e-6

    # (shape, dtype, tolerance): small shapes covering all code paths.
    cases = [
        ((2, 8, 32), jnp.float32, 1e-4),    # toy module shape -> folded lane-dense path (tiny rows)
        ((4, 32, 32), jnp.float32, 1e-4),   # hidden<128, folded lane-dense path (MXU segment sums)
        ((2, 8, 256), jnp.float32, 1e-5),   # hidden>=128, plain lane-dense path
        ((3, 5, 48), jnp.float32, 1e-5),    # hidden doesn't divide 128 -> plain fallback, partial row block
        ((4, 64, 128), jnp.bfloat16, 5e-2), # bf16 in/out, plain path
    ]

    for idx, (shape, dtype, tol) in enumerate(cases):
        key, sub = jax.random.split(key)
        hidden = shape[-1]
        x = jax.random.normal(sub, shape, dtype=jnp.float32).astype(dtype)

        # Module init: gamma=ones, beta=zeros (nn.Parameter(torch.ones/zeros)).
        param_sets = [
            (jnp.ones((hidden,), jnp.float32), jnp.zeros((hidden,), jnp.float32)),
            # Extra deterministic non-trivial params to validate gamma/beta handling.
            (jnp.linspace(0.5, 1.5, hidden, dtype=jnp.float32),
             jnp.linspace(-0.3, 0.3, hidden, dtype=jnp.float32)),
        ]
        for gamma, beta in param_sets:
            out = jax.block_until_ready(layernorm_pallas(x, gamma, beta, eps))
            ref = layernorm_ref(x, gamma, beta, eps)
            assert out.shape == x.shape and out.dtype == x.dtype
            assert jnp.allclose(out.astype(jnp.float32), ref.astype(jnp.float32),
                                atol=tol, rtol=tol), (
                f"mismatch vs reference in case {idx} shape={shape} dtype={dtype}"
            )

    print("KERNEL_OK")
</pallas_src>

<mosaic_0001>
module attributes {stable_mosaic.version = 11 : i64} {
  func.func @_ln_folded_kernel(%arg0: i32, %arg1: memref<4x128xf32, #tpu.memory_space<vmem>>, %arg2: memref<1x128xf32, #tpu.memory_space<vmem>>, %arg3: memref<1x128xf32, #tpu.memory_space<vmem>>, %arg4: memref<128x128xf32, #tpu.memory_space<vmem>>, %arg5: memref<128x128xf32, #tpu.memory_space<vmem>>, %arg6: memref<4x128xf32, #tpu.memory_space<vmem>>) attributes {dimension_semantics = [#tpu.dimension_semantics<parallel>], iteration_bounds = array<i64: 1>, scalar_prefetch = 0 : i64, scratch_operands = 0 : i64, tpu.core_type = #tpu.core_type<tc>, window_params = [{transform_indices = @transform_0, window_bounds = array<i64: 4, 128>}, {pipeline_mode = #tpu.pipeline_mode<synchronous>, transform_indices = @transform_1, window_bounds = array<i64: 1, 128>}, {pipeline_mode = #tpu.pipeline_mode<synchronous>, transform_indices = @transform_2, window_bounds = array<i64: 1, 128>}, {pipeline_mode = #tpu.pipeline_mode<synchronous>, transform_indices = @transform_3, window_bounds = array<i64: 128, 128>}, {pipeline_mode = #tpu.pipeline_mode<synchronous>, transform_indices = @transform_4, window_bounds = array<i64: 128, 128>}, {transform_indices = @transform_5, window_bounds = array<i64: 4, 128>}]} {
    %c0 = arith.constant 0 : index
    %c0_0 = arith.constant 0 : index
    %0 = vector.load %arg1[%c0, %c0_0] : memref<4x128xf32, #tpu.memory_space<vmem>>, vector<4x128xf32>
    %c0_1 = arith.constant 0 : index
    %c0_2 = arith.constant 0 : index
    %1 = vector.load %arg4[%c0_1, %c0_2] : memref<128x128xf32, #tpu.memory_space<vmem>>, vector<128x128xf32>
    %c0_3 = arith.constant 0 : index
    %c0_4 = arith.constant 0 : index
    %2 = vector.load %arg5[%c0_3, %c0_4] : memref<128x128xf32, #tpu.memory_space<vmem>>, vector<128x128xf32>
    %cst = arith.constant dense<0.000000e+00> : vector<4x128xf32>
    %3 = tpu.matmul %0, %1, %cst {dimension_numbers = #tpu.dot_dimension_numbers<[1], [0], [0], [1], [0, 0, 1, 1], [], []>} : vector<4x128xf32>, vector<128x128xf32>, vector<4x128xf32> -> vector<4x128xf32>
    %cst_5 = arith.constant 3.125000e-02 : f32
    %4 = vector.broadcast %cst_5 : f32 to vector<4x128xf32>
    %5 = arith.mulf %3, %4 : vector<4x128xf32>
    %cst_6 = arith.constant dense<0.000000e+00> : vector<4x128xf32>
    %6 = tpu.matmul %5, %2, %cst_6 {dimension_numbers = #tpu.dot_dimension_numbers<[1], [0], [0], [1], [0, 0, 1, 1], [], []>} : vector<4x128xf32>, vector<128x128xf32>, vector<4x128xf32> -> vector<4x128xf32>
    %7 = arith.subf %0, %6 : vector<4x128xf32>
    %8 = arith.mulf %7, %7 : vector<4x128xf32>
    %cst_7 = arith.constant dense<0.000000e+00> : vector<4x128xf32>
    %9 = tpu.matmul %8, %1, %cst_7 {dimension_numbers = #tpu.dot_dimension_numbers<[1], [0], [0], [1], [0, 0, 1, 1], [], []>} : vector<4x128xf32>, vector<128x128xf32>, vector<4x128xf32> -> vector<4x128xf32>
    %cst_8 = arith.constant 0.0322580636 : f32
    %10 = vector.broadcast %cst_8 : f32 to vector<4x128xf32>
    %11 = arith.mulf %9, %10 : vector<4x128xf32>
    %12 = math.sqrt %11 : vector<4x128xf32>
    %cst_9 = arith.constant 9.99999997E-7 : f32
    %13 = vector.broadcast %cst_9 : f32 to vector<4x128xf32>
    %14 = arith.addf %12, %13 : vector<4x128xf32>
    %15 = tpu.reciprocal %14 : vector<4x128xf32> -> vector<4x128xf32>
    %cst_10 = arith.constant dense<0.000000e+00> : vector<4x128xf32>
    %16 = tpu.matmul %15, %2, %cst_10 {dimension_numbers = #tpu.dot_dimension_numbers<[1], [0], [0], [1], [0, 0, 1, 1], [], []>} : vector<4x128xf32>, vector<128x128xf32>, vector<4x128xf32> -> vector<4x128xf32>
    %c0_11 = arith.constant 0 : index
    %c0_12 = arith.constant 0 : index
    %17 = vector.load %arg2[%c0_11, %c0_12] : memref<1x128xf32, #tpu.memory_space<vmem>>, vector<1x128xf32>
    %c0_13 = arith.constant 0 : index
    %c0_14 = arith.constant 0 : index
    %18 = vector.load %arg3[%c0_13, %c0_14] : memref<1x128xf32, #tpu.memory_space<vmem>>, vector<1x128xf32>
    %19 = arith.mulf %7, %16 : vector<4x128xf32>
    %20 = vector.broadcast %17 : vector<1x128xf32> to vector<4x128xf32>
    %21 = arith.mulf %19, %20 : vector<4x128xf32>
    %22 = vector.broadcast %18 : vector<1x128xf32> to vector<4x128xf32>
    %23 = arith.addf %21, %22 : vector<4x128xf32>
    %c0_15 = arith.constant 0 : index
    %c0_16 = arith.constant 0 : index
    %24 = vector.load %arg6[%c0_15, %c0_16] : memref<4x128xf32, #tpu.memory_space<vmem>>, vector<4x128xf32>
    tpu.vector_store %arg6[%c0_15, %c0_16], %23 {strides = array<i32>} : memref<4x128xf32, #tpu.memory_space<vmem>>, vector<4x128xf32>,
    return
  }
  func.func @transform_0(%arg0: i32) -> (i32, i32) {
    %c0_i32 = arith.constant 0 : i32
    %c0_i32_0 = arith.constant 0 : i32
    return %arg0, %c0_i32 : i32, i32
  }
  func.func @transform_1(%arg0: i32) -> (i32, i32) {
    %c0_i32 = arith.constant 0 : i32
    %c0_i32_0 = arith.constant 0 : i32
    %c0_i32_1 = arith.constant 0 : i32
    return %c0_i32, %c0_i32_0 : i32, i32
  }
  func.func @transform_2(%arg0: i32) -> (i32, i32) {
    %c0_i32 = arith.constant 0 : i32
    %c0_i32_0 = arith.constant 0 : i32
    %c0_i32_1 = arith.constant 0 : i32
    return %c0_i32, %c0_i32_0 : i32, i32
  }
  func.func @transform_3(%arg0: i32) -> (i32, i32) {
    %c0_i32 = arith.constant 0 : i32
    %c0_i32_0 = arith.constant 0 : i32
    %c0_i32_1 = arith.constant 0 : i32
    return %c0_i32, %c0_i32_0 : i32, i32
  }
  func.func @transform_4(%arg0: i32) -> (i32, i32) {
    %c0_i32 = arith.constant 0 : i32
    %c0_i32_0 = arith.constant 0 : i32
    %c0_i32_1 = arith.constant 0 : i32
    return %c0_i32, %c0_i32_0 : i32, i32
  }
  func.func @transform_5(%arg0: i32) -> (i32, i32) {
    %c0_i32 = arith.constant 0 : i32
    %c0_i32_0 = arith.constant 0 : i32
    return %arg0, %c0_i32 : i32, i32
  }
}

</mosaic_0001>

<llo_original>
// kernel: tpu_custom_call.1
$region0: #{tpu_custom_call.1}
  #allocation0 [shape = 'u32[]', space=smem, size = 0x4, offset = 0x4, fixed_abs, tag = 'smem constant byte address 0x4 - core index']
  #allocation1 [shape = 'u32[144,128]{1,0:T(1,128)}', space=vmem, size = 0x12000, scoped, tag = 'internal scratch']
  %s0 = inlined_call_operand.hbm [shape: f32[4,128], index: 0, kind: input, shape index: {}]
  %s1 = inlined_call_operand.vmem [shape: f32[1,128], index: 1, kind: input, shape index: {}]
  %s2 = inlined_call_operand.vmem [shape: f32[1,128], index: 2, kind: input, shape index: {}]
  %s3 = inlined_call_operand.hbm [shape: f32[128,128], index: 3, kind: input, shape index: {}]
  %s4 = inlined_call_operand.hbm [shape: f32[128,128], index: 4, kind: input, shape index: {}]
  %s5 = inlined_call_operand.hbm [shape: f32[4,128], index: 5, kind: output, shape index: {}]
  %s6 = sld [smem:[#allocation0]]
  $region42: #{tpu_custom_call.1} parent=0
    _
  %s8 = ssub.s32 1, %s6
  %s9 = scalar_select 0, %s8, %s6
  $region1: #{tpu_custom_call.1} parent=0
    #allocation2 [shape = 'u8[2048]{0}', space=vmem, size = 0x800, scoped, tag = 'input window, operand 0, single buffered']
    #allocation3 [shape = 's32[1]{0}', space=sflag, size = 0x4, scoped, tag = 'scoped memory for tpu_custom_call.1']
    #allocation4 [shape = 's32[1]{0}', space=sflag, size = 0x4, scoped, tag = 'scoped memory for tpu_custom_call.1']
    #allocation5 [shape = 'u8[65536]{0}', space=vmem, size = 0x10000, scoped, tag = 'input window, operand 3, single buffered']
    #allocation6 [shape = 's32[1]{0}', space=sflag, size = 0x4, scoped, tag = 'scoped memory for tpu_custom_call.1']
    #allocation7 [shape = 'u8[65536]{0}', space=vmem, size = 0x10000, scoped, tag = 'input window, operand 4, single buffered']
    #allocation8 [shape = 'u8[2048]{0}', space=vmem, size = 0x800, scoped, tag = 'output window, operand 0, single buffered']
    %10 = vsyncpa [#allocation3], 0
    %11 = vsyncpa [#allocation6], 0
    %12 = vsyncpa [#allocation4], 0
    // Predicated region
    $region2: #{tpu_custom_call.1} parent=1 // pred_check
      _
    $region3: #{tpu_custom_call.1} parent=1 // pred_check_branch
      %14 = sbr.rel (0) target = $region5
    $region4: #{tpu_custom_call.1} parent=1 // pred_region
      %s16 = ssub.s32 64, 64
      %17 = vsyncadd [#allocation3], %s16
      %s19 = sshll.u32 [#allocation2], 4
      %s20 = int_to_ptr.vmem [resolvable:$true] %s19
      %22 = dma.hbm_to_vmem [thread:$0]  %s0, 64, %s20, [#allocation3]
    $region5: #{tpu_custom_call.1} parent=1 // pred_fallthru
      _
    // Predicated region
    $region6: #{tpu_custom_call.1} parent=1 // pred_check
      _
    $region7: #{tpu_custom_call.1} parent=1 // pred_check_branch
      %24 = sbr.rel (0) target = $region9
    $region8: #{tpu_custom_call.1} parent=1 // pred_region
      _
    $region9: #{tpu_custom_call.1} parent=1 // pred_fallthru
      _
    // Predicated region
    $region10: #{tpu_custom_call.1} parent=1 // pred_check
      _
    $region11: #{tpu_custom_call.1} parent=1 // pred_check_branch
      %26 = sbr.rel (0) target = $region13
    $region12: #{tpu_custom_call.1} parent=1 // pred_region
      _
    $region13: #{tpu_custom_call.1} parent=1 // pred_fallthru
      _
    // Predicated region
    $region14: #{tpu_custom_call.1} parent=1 // pred_check
      _
    $region15: #{tpu_custom_call.1} parent=1 // pred_check_branch
      %28 = sbr.rel (0) target = $region17
    $region16: #{tpu_custom_call.1} parent=1 // pred_region
      %s30 = ssub.s32 2048, 2048
      %31 = vsyncadd [#allocation6], %s30
      %s32 = sshll.u32 [#allocation5], 4
      %s33 = int_to_ptr.vmem [resolvable:$true] %s32
      %38 = dma.hbm_to_vmem [thread:$0]  %s3, 2048, %s33, [#allocation6], 128, 128, 8
    $region17: #{tpu_custom_call.1} parent=1 // pred_fallthru
      _
    // Predicated region
    $region18: #{tpu_custom_call.1} parent=1 // pred_check
      _
    $region19: #{tpu_custom_call.1} parent=1 // pred_check_branch
      %40 = sbr.rel (0) target = $region21
    $region20: #{tpu_custom_call.1} parent=1 // pred_region
      %s42 = ssub.s32 2048, 2048
      %43 = vsyncadd [#allocation6], %s42
      %s44 = sshll.u32 [#allocation7], 4
      %s45 = int_to_ptr.vmem [resolvable:$true] %s44
      %50 = dma.hbm_to_vmem [thread:$0]  %s4, 2048, %s45, [#allocation6], 128, 128, 8
    $region21: #{tpu_custom_call.1} parent=1 // pred_fallthru
      _
    // Predicated region
    $region22: #{tpu_custom_call.1} parent=1 // pred_check
      _
    $region23: #{tpu_custom_call.1} parent=1 // pred_check_branch
      %52 = sbr.rel (0) target = $region25
    $region24: #{tpu_custom_call.1} parent=1 // pred_region
      %53 = dma.done [#allocation3], 64
    $region25: #{tpu_custom_call.1} parent=1 // pred_fallthru
      _
    // Predicated region
    $region26: #{tpu_custom_call.1} parent=1 // pred_check
      _
    $region27: #{tpu_custom_call.1} parent=1 // pred_check_branch
      %55 = sbr.rel (0) target = $region29
    $region28: #{tpu_custom_call.1} parent=1 // pred_region
      %56 = dma.done [#allocation6], 2048
    $region29: #{tpu_custom_call.1} parent=1 // pred_fallthru
      _
    // Predicated region
    $region30: #{tpu_custom_call.1} parent=1 // pred_check
      _
    $region31: #{tpu_custom_call.1} parent=1 // pred_check_branch
      %58 = sbr.rel (0) target = $region33
    $region32: #{tpu_custom_call.1} parent=1 // pred_region
      %59 = dma.done [#allocation6], 2048
    $region33: #{tpu_custom_call.1} parent=1 // pred_fallthru
      _
    %v60 = vld [vmem:[#allocation2] sm:$0xf]
    %v61 = vld [vmem:[#allocation5] sm:$0xff]
    %v62 = vld [vmem:[#allocation5 + $0x8] sm:$0xff]
    %v63 = vld [vmem:[#allocation5 + $0x10] sm:$0xff]
    %v64 = vld [vmem:[#allocation5 + $0x18] sm:$0xff]
    %v65 = vld [vmem:[#allocation5 + $0x20] sm:$0xff]
    %v66 = vld [vmem:[#allocation5 + $0x28] sm:$0xff]
    %v67 = vld [vmem:[#allocation5 + $0x30] sm:$0xff]
    %v68 = vld [vmem:[#allocation5 + $0x38] sm:$0xff]
    %v69 = vld [vmem:[#allocation5 + $0x40] sm:$0xff]
    %v70 = vld [vmem:[#allocation5 + $0x48] sm:$0xff]
    %v71 = vld [vmem:[#allocation5 + $0x50] sm:$0xff]
    %v72 = vld [vmem:[#allocation5 + $0x58] sm:$0xff]
    %v73 = vld [vmem:[#allocation5 + $0x60] sm:$0xff]
    %v74 = vld [vmem:[#allocation5 + $0x68] sm:$0xff]
    %v75 = vld [vmem:[#allocation5 + $0x70] sm:$0xff]
    %v76 = vld [vmem:[#allocation5 + $0x78] sm:$0xff]
    %v77 = vld [vmem:[#allocation7] sm:$0xff]
    %v78 = vld [vmem:[#allocation7 + $0x8] sm:$0xff]
    %v79 = vld [vmem:[#allocation7 + $0x10] sm:$0xff]
    %v80 = vld [vmem:[#allocation7 + $0x18] sm:$0xff]
    %v81 = vld [vmem:[#allocation7 + $0x20] sm:$0xff]
    %v82 = vld [vmem:[#allocation7 + $0x28] sm:$0xff]
    %v83 = vld [vmem:[#allocation7 + $0x30] sm:$0xff]
    %v84 = vld [vmem:[#allocation7 + $0x38] sm:$0xff]
    %v85 = vld [vmem:[#allocation7 + $0x40] sm:$0xff]
    %v86 = vld [vmem:[#allocation7 + $0x48] sm:$0xff]
    %v87 = vld [vmem:[#allocation7 + $0x50] sm:$0xff]
    %v88 = vld [vmem:[#allocation7 + $0x58] sm:$0xff]
    %v89 = vld [vmem:[#allocation7 + $0x60] sm:$0xff]
    %v90 = vld [vmem:[#allocation7 + $0x68] sm:$0xff]
    %v91 = vld [vmem:[#allocation7 + $0x70] sm:$0xff]
    %v92 = vld [vmem:[#allocation7 + $0x78] sm:$0xff]
    %93 = vmatprep.subr.mxu0 0.0
    %94 = vmatpush1.msra.mxu0 %v61
    %95 = vmatprep.subr.mxu0 0.0
    %96 = vmatpush1.msra.mxu0 %v62
    %97 = vmatprep.subr.mxu0 0.0
    %98 = vmatpush1.msra.mxu0 %v63
    %99 = vmatprep.subr.mxu0 0.0
    %100 = vmatpush1.msra.mxu0 %v64
    %101 = vmatprep.subr.mxu0 0.0
    %102 = vmatpush1.msra.mxu0 %v65
    %103 = vmatprep.subr.mxu0 0.0
    %104 = vmatpush1.msra.mxu0 %v66
    %105 = vmatprep.subr.mxu0 0.0
    %106 = vmatpush1.msra.mxu0 %v67
    %107 = vmatprep.subr.mxu0 0.0
    %108 = vmatpush1.msra.mxu0 %v68
    %109 = vmatprep.subr.mxu0 0.0
    %110 = vmatpush1.msra.mxu0 %v69
    %111 = vmatprep.subr.mxu0 0.0
    %112 = vmatpush1.msra.mxu0 %v70
    %113 = vmatprep.subr.mxu0 0.0
    %114 = vmatpush1.msra.mxu0 %v71
    %115 = vmatprep.subr.mxu0 0.0
    %116 = vmatpush1.msra.mxu0 %v72
    %117 = vmatprep.subr.mxu0 0.0
    %118 = vmatpush1.msra.mxu0 %v73
    %119 = vmatprep.subr.mxu0 0.0
    %120 = vmatpush1.msra.mxu0 %v74
    %121 = vmatprep.subr.mxu0 0.0
    %122 = vmatpush1.msra.mxu0 %v75
    %123 = vmatprep.subr.mxu0 0.0
    %124 = vmatpush1.msra.mxu0 %v76
    %125 = vmatprep.subr.mxu0 0.0
    %126 = vmatpush1.msra.mxu0 0.0
    %127 = vmatprep.subr.mxu0 0.0
    %128 = vmatpush1.msra.mxu0 0.0
    %129 = vmatprep.subr.mxu0 0.0
    %130 = vmatpush1.msra.mxu0 0.0
    %131 = vmatprep.subr.mxu0 0.0
    %132 = vmatpush1.msra.mxu0 0.0
    %133 = vmatprep.subr.mxu0 0.0
    %134 = vmatpush1.msra.mxu0 0.0
    %135 = vmatprep.subr.mxu0 0.0
    %136 = vmatpush1.msra.mxu0 0.0
    %137 = vmatprep.subr.mxu0 0.0
    %138 = vmatpush1.msra.mxu0 0.0
    %139 = vmatprep.subr.mxu0 0.0
    %140 = vmatpush1.msra.mxu0 0.0
    %141 = vmatprep.subr.mxu0 0.0
    %142 = vmatpush1.msra.mxu0 0.0
    %143 = vmatprep.subr.mxu0 0.0
    %144 = vmatpush1.msra.mxu0 0.0
    %145 = vmatprep.subr.mxu0 0.0
    %146 = vmatpush1.msra.mxu0 0.0
    %147 = vmatprep.subr.mxu0 0.0
    %148 = vmatpush1.msra.mxu0 0.0
    %149 = vmatprep.subr.mxu0 0.0
    %150 = vmatpush1.msra.mxu0 0.0
    %151 = vmatprep.subr.mxu0 0.0
    %152 = vmatpush1.msra.mxu0 0.0
    %153 = vmatprep.subr.mxu0 0.0
    %154 = vmatpush1.msra.mxu0 0.0
    %155 = vmatprep.subr.mxu0 0.0
    %156 = vmatpush1.msra.mxu0 0.0
    %157 = vmatprep.mubr.f32.mxu0 0.0
    %158 = vmatmul.mubr.f32.gmra.mrb[0].mxu0 %v60
    %v159 = vpop.f32.mrb[0].mxu0
    %v160 = vadd.f32 0.0, %v159
    %v161 = vpop.f32.mrb[0].mxu0
    %162 = vdwg.mxu0
    %v163 = vmul.f32 %v160, 0.03125
    %164 = vmatprep.subr.mxu0 0.0
    %165 = vmatpush1.msra.mxu0 %v77
    %166 = vmatprep.subr.mxu0 0.0
    %167 = vmatpush1.msra.mxu0 %v78
    %168 = vmatprep.subr.mxu0 0.0
    %169 = vmatpush1.msra.mxu0 %v79
    %170 = vmatprep.subr.mxu0 0.0
    %171 = vmatpush1.msra.mxu0 %v80
    %172 = vmatprep.subr.mxu0 0.0
    %173 = vmatpush1.msra.mxu0 %v81
    %174 = vmatprep.subr.mxu0 0.0
    %175 = vmatpush1.msra.mxu0 %v82
    %176 = vmatprep.subr.mxu0 0.0
    %177 = vmatpush1.msra.mxu0 %v83
    %178 = vmatprep.subr.mxu0 0.0
    %179 = vmatpush1.msra.mxu0 %v84
    %180 = vmatprep.subr.mxu0 0.0
    %181 = vmatpush1.msra.mxu0 %v85
    %182 = vmatprep.subr.mxu0 0.0
    %183 = vmatpush1.msra.mxu0 %v86
    %184 = vmatprep.subr.mxu0 0.0
    %185 = vmatpush1.msra.mxu0 %v87
    %186 = vmatprep.subr.mxu0 0.0
    %187 = vmatpush1.msra.mxu0 %v88
    %188 = vmatprep.subr.mxu0 0.0
    %189 = vmatpush1.msra.mxu0 %v89
    %190 = vmatprep.subr.mxu0 0.0
    %191 = vmatpush1.msra.mxu0 %v90
    %192 = vmatprep.subr.mxu0 0.0
    %193 = vmatpush1.msra.mxu0 %v91
    %194 = vmatprep.subr.mxu0 0.0
    %195 = vmatpush1.msra.mxu0 %v92
    %196 = vmatprep.subr.mxu0 0.0
    %197 = vmatpush1.msra.mxu0 0.0
    %198 = vmatprep.subr.mxu0 0.0
    %199 = vmatpush1.msra.mxu0 0.0
    %200 = vmatprep.subr.mxu0 0.0
    %201 = vmatpush1.msra.mxu0 0.0
    %202 = vmatprep.subr.mxu0 0.0
    %203 = vmatpush1.msra.mxu0 0.0
    %204 = vmatprep.subr.mxu0 0.0
    %205 = vmatpush1.msra.mxu0 0.0
    %206 = vmatprep.subr.mxu0 0.0
    %207 = vmatpush1.msra.mxu0 0.0
    %208 = vmatprep.subr.mxu0 0.0
    %209 = vmatpush1.msra.mxu0 0.0
    %210 = vmatprep.subr.mxu0 0.0
    %211 = vmatpush1.msra.mxu0 0.0
    %212 = vmatprep.subr.mxu0 0.0
    %213 = vmatpush1.msra.mxu0 0.0
    %214 = vmatprep.subr.mxu0 0.0
    %215 = vmatpush1.msra.mxu0 0.0
    %216 = vmatprep.subr.mxu0 0.0
    %217 = vmatpush1.msra.mxu0 0.0
    %218 = vmatprep.subr.mxu0 0.0
    %219 = vmatpush1.msra.mxu0 0.0
    %220 = vmatprep.subr.mxu0 0.0
    %221 = vmatpush1.msra.mxu0 0.0
    %222 = vmatprep.subr.mxu0 0.0
    %223 = vmatpush1.msra.mxu0 0.0
    %224 = vmatprep.subr.mxu0 0.0
    %225 = vmatpush1.msra.mxu0 0.0
    %226 = vmatprep.subr.mxu0 0.0
    %227 = vmatpush1.msra.mxu0 0.0
    %228 = vmatprep.mubr.f32.mxu0 0.0
    %229 = vmatmul.mubr.f32.gmra.mrb[0].mxu0 %v163
    %v230 = vpop.f32.mrb[0].mxu0
    %v231 = vadd.f32 0.0, %v230
    %v232 = vpop.f32.mrb[0].mxu0
    %233 = vdwg.mxu0
    %v234 = vsub.f32 %v60, %v231
    %v235 = vmul.f32 %v234, %v234
    %236 = vmatprep.subr.mxu0 0.0
    %237 = vmatpush1.msra.mxu0 %v61
    %238 = vmatprep.subr.mxu0 0.0
    %239 = vmatpush1.msra.mxu0 %v62
    %240 = vmatprep.subr.mxu0 0.0
    %241 = vmatpush1.msra.mxu0 %v63
    %242 = vmatprep.subr.mxu0 0.0
    %243 = vmatpush1.msra.mxu0 %v64
    %244 = vmatprep.subr.mxu0 0.0
    %245 = vmatpush1.msra.mxu0 %v65
    %246 = vmatprep.subr.mxu0 0.0
    %247 = vmatpush1.msra.mxu0 %v66
    %248 = vmatprep.subr.mxu0 0.0
    %249 = vmatpush1.msra.mxu0 %v67
    %250 = vmatprep.subr.mxu0 0.0
    %251 = vmatpush1.msra.mxu0 %v68
    %252 = vmatprep.subr.mxu0 0.0
    %253 = vmatpush1.msra.mxu0 %v69
    %254 = vmatprep.subr.mxu0 0.0
    %255 = vmatpush1.msra.mxu0 %v70
    %256 = vmatprep.subr.mxu0 0.0
    %257 = vmatpush1.msra.mxu0 %v71
    %258 = vmatprep.subr.mxu0 0.0
    %259 = vmatpush1.msra.mxu0 %v72
    %260 = vmatprep.subr.mxu0 0.0
    %261 = vmatpush1.msra.mxu0 %v73
    %262 = vmatprep.subr.mxu0 0.0
    %263 = vmatpush1.msra.mxu0 %v74
    %264 = vmatprep.subr.mxu0 0.0
    %265 = vmatpush1.msra.mxu0 %v75
    %266 = vmatprep.subr.mxu0 0.0
    %267 = vmatpush1.msra.mxu0 %v76
    %268 = vmatprep.subr.mxu0 0.0
    %269 = vmatpush1.msra.mxu0 0.0
    %270 = vmatprep.subr.mxu0 0.0
    %271 = vmatpush1.msra.mxu0 0.0
    %272 = vmatprep.subr.mxu0 0.0
    %273 = vmatpush1.msra.mxu0 0.0
    %274 = vmatprep.subr.mxu0 0.0
    %275 = vmatpush1.msra.mxu0 0.0
    %276 = vmatprep.subr.mxu0 0.0
    %277 = vmatpush1.msra.mxu0 0.0
    %278 = vmatprep.subr.mxu0 0.0
    %279 = vmatpush1.msra.mxu0 0.0
    %280 = vmatprep.subr.mxu0 0.0
    %281 = vmatpush1.msra.mxu0 0.0
    %282 = vmatprep.subr.mxu0 0.0
    %283 = vmatpush1.msra.mxu0 0.0
    %284 = vmatprep.subr.mxu0 0.0
    %285 = vmatpush1.msra.mxu0 0.0
    %286 = vmatprep.subr.mxu0 0.0
    %287 = vmatpush1.msra.mxu0 0.0
    %288 = vmatprep.subr.mxu0 0.0
    %289 = vmatpush1.msra.mxu0 0.0
    %290 = vmatprep.subr.mxu0 0.0
    %291 = vmatpush1.msra.mxu0 0.0
    %292 = vmatprep.subr.mxu0 0.0
    %293 = vmatpush1.msra.mxu0 0.0
    %294 = vmatprep.subr.mxu0 0.0
    %295 = vmatpush1.msra.mxu0 0.0
    %296 = vmatprep.subr.mxu0 0.0
    %297 = vmatpush1.msra.mxu0 0.0
    %298 = vmatprep.subr.mxu0 0.0
    %299 = vmatpush1.msra.mxu0 0.0
    %300 = vmatprep.mubr.f32.mxu0 0.0
    %301 = vmatmul.mubr.f32.gmra.mrb[0].mxu0 %v235
    %v302 = vpop.f32.mrb[0].mxu0
    %v303 = vadd.f32 0.0, %v302
    %v304 = vpop.f32.mrb[0].mxu0
    %305 = vdwg.mxu0
    %v306 = vmul.f32 %v303, 0.032258064
    %v307 = vrsqrt.pop %v306
    %v308 = vmul.f32 %v306, %v307
    %vm309 = vcmp.eq.f32.partialorder %v306, inf
    %v310 = vsel %vm309, %v306, %v308
    %vm311 = vcmp.eq.f32.partialorder %v306, 0.0
    %v312 = vand.u32 %v306, 2147483648
    %v313 = vsel %vm311, %v312, %v310
    %v314 = vadd.f32 %v313, 1e-06
    %v315 = vrcp.pop %v314
    %316 = vmatprep.subr.mxu0 0.0
    %317 = vmatpush1.msra.mxu0 %v77
    %318 = vmatprep.subr.mxu0 0.0
    %319 = vmatpush1.msra.mxu0 %v78
    %320 = vmatprep.subr.mxu0 0.0
    %321 = vmatpush1.msra.mxu0 %v79
    %322 = vmatprep.subr.mxu0 0.0
    %323 = vmatpush1.msra.mxu0 %v80
    %324 = vmatprep.subr.mxu0 0.0
    %325 = vmatpush1.msra.mxu0 %v81
    %326 = vmatprep.subr.mxu0 0.0
    %327 = vmatpush1.msra.mxu0 %v82
    %328 = vmatprep.subr.mxu0 0.0
    %329 = vmatpush1.msra.mxu0 %v83
    %330 = vmatprep.subr.mxu0 0.0
    %331 = vmatpush1.msra.mxu0 %v84
    %332 = vmatprep.subr.mxu0 0.0
    %333 = vmatpush1.msra.mxu0 %v85
    %334 = vmatprep.subr.mxu0 0.0
    %335 = vmatpush1.msra.mxu0 %v86
    %336 = vmatprep.subr.mxu0 0.0
    %337 = vmatpush1.msra.mxu0 %v87
    %338 = vmatprep.subr.mxu0 0.0
    %339 = vmatpush1.msra.mxu0 %v88
    %340 = vmatprep.subr.mxu0 0.0
    %341 = vmatpush1.msra.mxu0 %v89
    %342 = vmatprep.subr.mxu0 0.0
    %343 = vmatpush1.msra.mxu0 %v90
    %344 = vmatprep.subr.mxu0 0.0
    %345 = vmatpush1.msra.mxu0 %v91
    %346 = vmatprep.subr.mxu0 0.0
    %347 = vmatpush1.msra.mxu0 %v92
    %348 = vmatprep.subr.mxu0 0.0
    %349 = vmatpush1.msra.mxu0 0.0
    %350 = vmatprep.subr.mxu0 0.0
    %351 = vmatpush1.msra.mxu0 0.0
    %352 = vmatprep.subr.mxu0 0.0
    %353 = vmatpush1.msra.mxu0 0.0
    %354 = vmatprep.subr.mxu0 0.0
    %355 = vmatpush1.msra.mxu0 0.0
    %356 = vmatprep.subr.mxu0 0.0
    %357 = vmatpush1.msra.mxu0 0.0
    %358 = vmatprep.subr.mxu0 0.0
    %359 = vmatpush1.msra.mxu0 0.0
    %360 = vmatprep.subr.mxu0 0.0
    %361 = vmatpush1.msra.mxu0 0.0
    %362 = vmatprep.subr.mxu0 0.0
    %363 = vmatpush1.msra.mxu0 0.0
    %364 = vmatprep.subr.mxu0 0.0
    %365 = vmatpush1.msra.mxu0 0.0
    %366 = vmatprep.subr.mxu0 0.0
    %367 = vmatpush1.msra.mxu0 0.0
    %368 = vmatprep.subr.mxu0 0.0
    %369 = vmatpush1.msra.mxu0 0.0
    %370 = vmatprep.subr.mxu0 0.0
    %371 = vmatpush1.msra.mxu0 0.0
    %372 = vmatprep.subr.mxu0 0.0
    %373 = vmatpush1.msra.mxu0 0.0
    %374 = vmatprep.subr.mxu0 0.0
    %375 = vmatpush1.msra.mxu0 0.0
    %376 = vmatprep.subr.mxu0 0.0
    %377 = vmatpush1.msra.mxu0 0.0
    %378 = vmatprep.subr.mxu0 0.0
    %379 = vmatpush1.msra.mxu0 0.0
    %380 = vmatprep.mubr.f32.mxu0 0.0
    %381 = vmatmul.mubr.f32.gmra.mrb[0].mxu0 %v315
    %v382 = vpop.f32.mrb[0].mxu0
    %v383 = vadd.f32 0.0, %v382
    %v384 = vpop.f32.mrb[0].mxu0
    %385 = vdwg.mxu0
    %v386 = vld [vmem:[%s1] sm:$0x1]
    %v387 = vld [vmem:[%s2] sm:$0x1]
    %v388 = vmul.f32 %v234, %v383
    %v390 = vlaneseq
    %v391 = vshrl.u32 %v390, 7
    %v392 = vsub.s32 0, %v391
    %v393 = vrot.slane %v386, %v392
    %v395 = vmul.f32 %v388, %v393
    %v397 = vlaneseq
    %v398 = vshrl.u32 %v397, 7
    %v399 = vsub.s32 0, %v398
    %v400 = vrot.slane %v387, %v399
    %v402 = vadd.f32 %v395, %v400
    %403 = vst [vmem:[#allocation8] sm:$0xf] %v402
    // Predicated region
    $region34: #{tpu_custom_call.1} parent=1 // pred_check
      _
    $region35: #{tpu_custom_call.1} parent=1 // pred_check_branch
      %405 = sbr.rel (0) target = $region37
    $region36: #{tpu_custom_call.1} parent=1 // pred_region
      %s407 = ssub.s32 64, 64
      %408 = vsyncadd [#allocation4], %s407
      %s410 = sshll.u32 [#allocation8], 4
      %s411 = int_to_ptr.vmem [resolvable:$true] %s410
      %413 = dma.vmem_to_hbm [thread:$0]  %s411, 64, %s5, [#allocation4]
    $region37: #{tpu_custom_call.1} parent=1 // pred_fallthru
      _
    // Predicated region
    $region38: #{tpu_custom_call.1} parent=1 // pred_check
      _
    $region39: #{tpu_custom_call.1} parent=1 // pred_check_branch
      %415 = sbr.rel (0) target = $region41
    $region40: #{tpu_custom_call.1} parent=1 // pred_region
      %416 = dma.done [#allocation4], 64
    $region41: #{tpu_custom_call.1} parent=1 // pred_fallthru
      _
    %417 = vsyncpa [#allocation3], 1
    %418 = vsyncpa [#allocation6], 1
    %419 = vsyncpa [#allocation4], 1

</llo_original>
